<compile_context>
chip_gen: v5e
topology: v5e:2x2
jax: 0.10.0
libtpu: 0.0.40
codegen_flags: <defaults>
</compile_context>

<pallas_src>
import functools

import jax
import jax.numpy as jnp
from jax.experimental import pallas as pl
from jax.experimental.pallas import tpu as pltpu


# ---------------------------------------------------------------------------
# Hardware-aware configuration (v5e/v6e: 128 MiB VMEM, 1 TC; v7x: 64 MiB, 2 TC)
# ---------------------------------------------------------------------------
def _tpu_config():
    try:
        cap = int(pltpu.get_tpu_info().vmem_capacity_bytes)
    except Exception:
        cap = 0
    if cap <= 0:
        cap = 64 * 1024 * 1024          # conservative default (v7x physical)
    # leave ~24 MiB headroom for compiler scratch: ~40 MiB on v7x, ~104 on v5e/v6e
    vmem_limit = max(32 * 1024 * 1024, min(cap - 24 * 1024 * 1024, 112 * 1024 * 1024))
    # per-buffer tile budget; ~6 live buffers with double-buffering
    tile_budget = int(max(2 * 1024 * 1024,
                          min(6 * 1024 * 1024, (vmem_limit - 8 * 1024 * 1024) // 6)))
    try:
        kind = jax.devices()[0].device_kind.lower()
    except Exception:
        kind = ""
    is_v5e = ("v5 lite" in kind) or ("v5e" in kind) or ("v5litepod" in kind)
    two_tc = ("v7" in kind) or ("tpu7" in kind) or ("7x" in kind) or ("v4" in kind)
    return vmem_limit, tile_budget, is_v5e, two_tc


_VMEM_LIMIT_BYTES, _TILE_BUDGET_BYTES, _IS_V5E, _TWO_TC = _tpu_config()


def _sublane_tile(dtype):
    """Native packed sublane tile: 8 for f32, 16 for bf16, 32 for int8/fp8."""
    bits = jnp.dtype(dtype).itemsize * 8
    return max(8, 256 // bits)


def _compute_dtype(dtype):
    """Add precision: bf16 stays native on v6e/v7x (bf16 VALUs); f32 on v5e."""
    dt = jnp.dtype(dtype)
    if not jnp.issubdtype(dt, jnp.floating) or dt.itemsize >= 4:
        return dtype
    if dt == jnp.dtype(jnp.bfloat16) and not _IS_V5E:
        return dtype
    return jnp.float32


# ----------------------- kernel 1: fused 1x1 conv + add ----------------------
def _fused_pw_conv_residual_kernel(w_ref, x_ref, o_ref):
    x_blk = x_ref[0]                                    # (C, tile_s)
    y = jnp.dot(w_ref[...], x_blk, preferred_element_type=jnp.float32)
    o_ref[0] = (y + x_blk.astype(jnp.float32)).astype(o_ref.dtype)


def fused_pointwise_conv_residual(x, w, *, budget_bytes=None):
    """out = einsum('nchw,dc->ndhw', x, w) + x, fused in one Pallas kernel."""
    budget_bytes = budget_bytes or _TILE_BUDGET_BYTES
    N, C, H, W = x.shape
    HW = H * W
    dtype = x.dtype
    itemsize = jnp.dtype(dtype).itemsize
    w = w.astype(dtype)                     # keep the MXU on the native (bf16) path

    x3 = x.reshape(N, C, HW)
    hw_p = HW
    if HW % 128 != 0:
        # lane-dense output (unmasked stores) beats vst.msk partial stores
        hw_p = ((HW + 127) // 128) * 128
        x3 = jnp.pad(x3, ((0, 0), (0, 0), (0, hw_p - HW)))

    tile_s = max(128, min(hw_p, (budget_bytes // max(1, C * itemsize)) // 128 * 128))
    if _TWO_TC and N == 1 and hw_p >= 256:
        # keep >= 2 "parallel" grid steps so both TensorCores have work
        tile_s = min(tile_s, ((hw_p // 2 + 127) // 128) * 128)
    grid = (N, pl.cdiv(hw_p, tile_s))

    w_spec_kwargs = {}
    if C * C * itemsize >= (1 << 20):
        # resident constant-index weight: don't waste VMEM double-buffering it
        w_spec_kwargs["pipeline_mode"] = pl.Buffered(1)

    out3 = pl.pallas_call(
        _fused_pw_conv_residual_kernel,
        out_shape=jax.ShapeDtypeStruct((N, C, hw_p), dtype),
        grid=grid,
        in_specs=[
            pl.BlockSpec((C, C), lambda n, s: (0, 0), **w_spec_kwargs),
            pl.BlockSpec((1, C, tile_s), lambda n, s: (n, 0, s)),
        ],
        out_specs=pl.BlockSpec((1, C, tile_s), lambda n, s: (n, 0, s)),
        compiler_params=pltpu.CompilerParams(
            dimension_semantics=("parallel", "parallel"),
            vmem_limit_bytes=_VMEM_LIMIT_BYTES,
        ),
        cost_estimate=pl.CostEstimate(
            flops=2 * N * C * C * hw_p + N * C * hw_p,
            transcendentals=0,
            bytes_accessed=(2 * N * C * hw_p + C * C) * itemsize,
        ),
    )(w, x3)

    if hw_p != HW:
        out3 = out3[:, :, :HW]
    return out3.reshape(N, C, H, W)


# ----------------- shared tiling plan for elementwise kernels ----------------
def _plan_elementwise_tiles(total, dtype, budget_bytes):
    """Lane-dense flattened view + VMEM-budgeted, dtype/core-aware block."""
    itemsize = jnp.dtype(dtype).itemsize
    sub = _sublane_tile(dtype)
    lane_candidates = (4096, 2048, 1024, 512, 256, 128)
    divisors = [c for c in lane_candidates if total % c == 0]
    if divisors:
        good = [c for c in divisors if total // c >= 2 * sub]
        cols = good[0] if good else divisors[0]
        rows = total // cols
        if rows <= sub:
            tr = rows                                   # full dim (always legal)
        else:
            budget_rows = max(sub, (budget_bytes // (cols * itemsize)) // sub * sub)
            tr = min(budget_rows, -(-rows // sub) * sub)
            if _TWO_TC and rows >= 2 * sub:
                # split only when a second TensorCore exists to take the work
                half = max(sub, -(-((rows + 1) // 2) // sub) * sub)
                tr = min(tr, half)
        return (rows, cols), (tr, cols), (pl.cdiv(rows, tr),), (lambda i: (i, 0))
    # Awkward totals: 1-D view, 128-multiple block, Pallas masks the tail
    # (no jnp.pad / slice HBM round trips).
    tile = max(1024, (budget_bytes // itemsize) // 1024 * 1024)
    if _TWO_TC and total >= 2048:
        tile = min(tile, -(-((total + 1) // 2) // 128) * 128)
    if tile >= total:
        tile = total                                    # full dim (always legal)
    return (total,), (tile,), (pl.cdiv(total, tile),), (lambda i: (i,))


# ------------------- kernel 2: fused elementwise fn + add --------------------
def _fused_elementwise_residual_kernel(x_ref, o_ref, *, fn, compute_dtype):
    xv = x_ref[...].astype(compute_dtype)
    o_ref[...] = (fn(xv) + xv).astype(o_ref.dtype)


def fused_elementwise_residual(x, fn, *, budget_bytes=None):
    """out = fn(x) + x with fn applied inside the Pallas block (x read once)."""
    budget_bytes = budget_bytes or _TILE_BUDGET_BYTES
    orig_shape, dtype = x.shape, x.dtype
    itemsize = jnp.dtype(dtype).itemsize
    total = x.size
    view, block, grid, index_map = _plan_elementwise_tiles(total, dtype, budget_bytes)
    kernel = functools.partial(_fused_elementwise_residual_kernel,
                               fn=fn, compute_dtype=_compute_dtype(dtype))
    out = pl.pallas_call(
        kernel,
        out_shape=jax.ShapeDtypeStruct(view, dtype),
        grid=grid,
        in_specs=[pl.BlockSpec(block, index_map)],
        out_specs=pl.BlockSpec(block, index_map),
        compiler_params=pltpu.CompilerParams(
            dimension_semantics=("parallel",) * len(grid),
            vmem_limit_bytes=_VMEM_LIMIT_BYTES,
        ),
        cost_estimate=pl.CostEstimate(
            flops=2 * total, transcendentals=total,
            bytes_accessed=2 * total * itemsize),
    )(x.reshape(view))
    return out.reshape(orig_shape)


# ------------------------ kernel 3: generic residual add ---------------------
def _residual_add_kernel(y_ref, x_ref, o_ref, *, compute_dtype):
    o_ref[...] = (y_ref[...].astype(compute_dtype)
                  + x_ref[...].astype(compute_dtype)).astype(o_ref.dtype)


def residual_add(y, x, *, budget_bytes=None):
    """Elementwise y + x via Pallas, preserving shape/dtype of x."""
    budget_bytes = budget_bytes or _TILE_BUDGET_BYTES
    assert y.shape == x.shape, (y.shape, x.shape)
    assert y.dtype == x.dtype, (y.dtype, x.dtype)
    orig_shape, dtype = x.shape, x.dtype
    itemsize = jnp.dtype(dtype).itemsize
    total = x.size
    view, block, grid, index_map = _plan_elementwise_tiles(total, dtype, budget_bytes)
    kernel = functools.partial(_residual_add_kernel,
                               compute_dtype=_compute_dtype(dtype))
    out = pl.pallas_call(
        kernel,
        out_shape=jax.ShapeDtypeStruct(view, dtype),
        grid=grid,
        in_specs=[pl.BlockSpec(block, index_map), pl.BlockSpec(block, index_map)],
        out_specs=pl.BlockSpec(block, index_map),
        input_output_aliases={0: 0},   # y (pure view reshape) is dead after the add
        compiler_params=pltpu.CompilerParams(
            dimension_semantics=("parallel",) * len(grid),
            vmem_limit_bytes=_VMEM_LIMIT_BYTES,
        ),
        cost_estimate=pl.CostEstimate(
            flops=total, transcendentals=0,
            bytes_accessed=3 * total * itemsize),
    )(y.reshape(view), x.reshape(view))
    return out.reshape(orig_shape)


# ----------------------------- Residual module -------------------------------
class PointwiseConv:
    """1x1 conv over channels in NCHW (no bias)."""

    def __init__(self, weight):
        self.weight = weight

    def __call__(self, x, **kwargs):
        return jnp.einsum("nchw,dc->ndhw", x, self.weight).astype(x.dtype)


class Elementwise:
    """Marker: fn is elementwise & shape/dtype-preserving → fuse into the block."""

    def __init__(self, fn):
        self.fn = fn

    def __call__(self, x, **kwargs):
        return self.fn(x, **kwargs)


class Residual:
    """JAX/Pallas equivalent of the PyTorch Residual(nn.Module)."""

    def __init__(self, fn):
        self.fn = fn

    def __call__(self, x, **kwargs):
        # Fast path 1: 1x1 conv + residual add fused into one Pallas kernel.
        if (isinstance(self.fn, PointwiseConv) and not kwargs and x.ndim == 4
                and self.fn.weight.ndim == 2
                and self.fn.weight.shape[0] == self.fn.weight.shape[1] == x.shape[1]):
            return fused_pointwise_conv_residual(x, self.fn.weight)
        # Fast path 2: elementwise fn fused into the Pallas block (x read once).
        if isinstance(self.fn, Elementwise):
            inner = self.fn.fn
            return fused_elementwise_residual(x, lambda t: inner(t, **kwargs))
        # Generic path: arbitrary inner fn (plain JAX) + Pallas residual add.
        # TODO(synk): arbitrary nn.Module fn bodies stay in plain JAX here.
        y = self.fn(x, **kwargs)
        return residual_add(y, x)


# ------------------------------------ demo -----------------------------------
if __name__ == "__main__":
    key = jax.random.PRNGKey(0)
    kx, kw = jax.random.split(key)

    N, C, H, W = 2, 4, 16, 16
    x = jax.random.normal(kx, (N, C, H, W), dtype=jnp.float32)
    w = jax.random.normal(kw, (C, C), dtype=jnp.float32) * 0.1

    # 1) fused 1x1-conv residual (the demo CNN block)
    block = Residual(PointwiseConv(w))
    out = jax.block_until_ready(block(x))
    ref = jnp.einsum("nchw,dc->ndhw", x, w).astype(x.dtype) + x
    assert out.shape == x.shape and out.dtype == x.dtype
    assert jnp.allclose(out, ref, atol=1e-5, rtol=1e-5)

    # 2) elementwise fn fused into the Pallas block (single x read / out write)
    gen = Residual(Elementwise(jnp.tanh))
    out2 = jax.block_until_ready(gen(x))
    ref2 = jnp.tanh(x) + x
    assert out2.shape == x.shape and out2.dtype == x.dtype
    assert jnp.allclose(out2, ref2, atol=1e-5, rtol=1e-5)

    # 3) fully generic fn (plain JAX) + standalone Pallas residual-add kernel
    gen2 = Residual(lambda t, **kw: t * jnp.float32(0.5) + 1.0)
    out3 = jax.block_until_ready(gen2(x))
    ref3 = x * 0.5 + 1.0 + x
    assert out3.shape == x.shape and out3.dtype == x.dtype
    assert jnp.allclose(out3, ref3, atol=1e-5, rtol=1e-5)

    print("KERNEL_OK")
</pallas_src>

<mosaic_0001>
module attributes {stable_mosaic.version = 11 : i64} {
  func.func @_fused_pw_conv_residual_kernel(%arg0: i32, %arg1: i32, %arg2: memref<4x4xf32, #tpu.memory_space<vmem>>, %arg3: memref<1x4x256xf32, #tpu.memory_space<vmem>>, %arg4: memref<1x4x256xf32, #tpu.memory_space<vmem>>) attributes {dimension_semantics = [#tpu.dimension_semantics<parallel>, #tpu.dimension_semantics<parallel>], iteration_bounds = array<i64: 2, 1>, scalar_prefetch = 0 : i64, scratch_operands = 0 : i64, tpu.core_type = #tpu.core_type<tc>, window_params = [{pipeline_mode = #tpu.pipeline_mode<synchronous>, transform_indices = @transform_0, window_bounds = array<i64: 4, 4>}, {transform_indices = @transform_1, window_bounds = array<i64: 1, 4, 256>}, {transform_indices = @transform_2, window_bounds = array<i64: 1, 4, 256>}]} {
    %c0 = arith.constant 0 : index
    %c0_0 = arith.constant 0 : index
    %c0_1 = arith.constant 0 : index
    %0 = vector.load %arg3[%c0, %c0_0, %c0_1] : memref<1x4x256xf32, #tpu.memory_space<vmem>>, vector<1x4x256xf32>
    %1 = vector.shape_cast %0 : vector<1x4x256xf32> to vector<4x256xf32>
    %c0_2 = arith.constant 0 : index
    %c0_3 = arith.constant 0 : index
    %2 = vector.load %arg2[%c0_2, %c0_3] : memref<4x4xf32, #tpu.memory_space<vmem>>, vector<4x4xf32>
    %cst = arith.constant dense<0.000000e+00> : vector<4x256xf32>
    %3 = tpu.matmul %2, %1, %cst {dimension_numbers = #tpu.dot_dimension_numbers<[1], [0], [0], [1], [0, 0, 1, 1], [], []>} : vector<4x4xf32>, vector<4x256xf32>, vector<4x256xf32> -> vector<4x256xf32>
    %4 = arith.addf %3, %1 : vector<4x256xf32>
    %c0_4 = arith.constant 0 : index
    %c0_5 = arith.constant 0 : index
    %c0_6 = arith.constant 0 : index
    %5 = vector.load %arg4[%c0_4, %c0_5, %c0_6] : memref<1x4x256xf32, #tpu.memory_space<vmem>>, vector<1x4x256xf32>
    %6 = vector.shape_cast %5 : vector<1x4x256xf32> to vector<4x256xf32>
    %7 = vector.shape_cast %4 : vector<4x256xf32> to vector<1x4x256xf32>
    tpu.vector_store %arg4[%c0_4, %c0_5, %c0_6], %7 {strides = array<i32>} : memref<1x4x256xf32, #tpu.memory_space<vmem>>, vector<1x4x256xf32>,
    return
  }
  func.func @transform_0(%arg0: i32, %arg1: i32) -> (i32, i32) {
    %c0_i32 = arith.constant 0 : i32
    %c0_i32_0 = arith.constant 0 : i32
    %c0_i32_1 = arith.constant 0 : i32
    return %c0_i32, %c0_i32_0 : i32, i32
  }
  func.func @transform_1(%arg0: i32, %arg1: i32) -> (i32, i32, i32) {
    %c0_i32 = arith.constant 0 : i32
    %c0_i32_0 = arith.constant 0 : i32
    return %arg0, %c0_i32, %arg1 : i32, i32, i32
  }
  func.func @transform_2(%arg0: i32, %arg1: i32) -> (i32, i32, i32) {
    %c0_i32 = arith.constant 0 : i32
    %c0_i32_0 = arith.constant 0 : i32
    return %arg0, %c0_i32, %arg1 : i32, i32, i32
  }
}

</mosaic_0001>

<llo_original>
// kernel: tpu_custom_call.1
$region0: #{tpu_custom_call.1}
  #allocation0 [shape = 'u32[]', space=smem, size = 0x4, offset = 0x4, fixed_abs, tag = 'smem constant byte address 0x4 - core index']
  #allocation1 [shape = 'u32[72,128]{1,0:T(1,128)}', space=vmem, size = 0x9000, scoped, tag = 'internal scratch']
  %s0 = inlined_call_operand.hbm [shape: f32[4,4], index: 0, kind: input, shape index: {}]
  %s1 = inlined_call_operand.hbm [shape: f32[2,4,256], index: 1, kind: input, shape index: {}]
  %s2 = inlined_call_operand.hbm [shape: f32[2,4,256], index: 2, kind: output, shape index: {}]
  %s3 = sld [smem:[#allocation0]]
  $region49: #{tpu_custom_call.1} parent=0
    _
  %s5 = ssub.s32 1, %s3
  %s6 = scalar_select 0, %s5, %s3
  $region1: #{tpu_custom_call.1} parent=0
    #allocation2 [shape = 'u8[2048]{0}', space=vmem, size = 0x800, scoped, tag = 'input window, operand 0, single buffered']
    #allocation3 [shape = 's32[2]{0}', space=sflag, size = 0x8, scoped, tag = 'scoped memory for tpu_custom_call.1']
    #allocation4 [shape = 's32[2]{0}', space=sflag, size = 0x8, scoped, tag = 'scoped memory for tpu_custom_call.1']
    #allocation5 [shape = 'u8[8192]{0}', space=vmem, size = 0x2000, scoped, tag = 'input window, operand 1']
    #allocation6 [shape = 's32[2]{0}', space=sflag, size = 0x8, scoped, tag = 'scoped memory for tpu_custom_call.1']
    #allocation7 [shape = 'u8[8192]{0}', space=vmem, size = 0x2000, scoped, tag = 'output window, operand 0']
    %7 = vsyncpa [#allocation3], 0
    %8 = vsyncpa [#allocation6], 0
    %s9 = scalar_lea.sflag [#allocation6], 1
    %10 = vsyncpa %s9, 0
    %11 = vsyncpa [#allocation4], 0
    %s12 = scalar_lea.sflag [#allocation4], 1
    %13 = vsyncpa %s12, 0
    loop: start=0, step=1, limit=4
    $region2: #{tpu_custom_call.1} parent=1 // loop_pre_header
      _
    $region3: #{tpu_custom_call.1} parent=1 // loop_header
      %s15 = sphi 0, %s19
      %p16 = scmp.ge.s32.totalorder %s15, 4
      %s22 = sphi 0, %s34
      %s23 = sphi 0, %s30
      %s24 = sphi 0, %s22
      %s25 = sphi 0, %s23
      %s26 = sphi 0, %s24
      %s27 = sphi 0, %s25
      %s35 = sphi 0, %s35
      %s37 = sphi 0, %s35
      %s38 = sphi 0, %s37
      %s52 = sphi 0, %s38
      %s60 = sphi 0, %s62
      %s63 = sphi 0, %s60
      %s64 = sphi 0, %s63
      %s80 = sphi 0, %s64
      %s88 = sphi 0, %s90
      %s91 = sphi 0, %s88
      %s92 = sphi 0, %s91
      %s108 = sphi 0, %s92
    $region4: #{tpu_custom_call.1} parent=1 // loop_header_branch
      %18 = sbr.rel (%p16) target = $region8
    $region5: #{tpu_custom_call.1} parent=1 // loop_body
      %s20 = ssub.s32 %s15, 1
      %s21 = ssub.s32 %s15, 2
      %s28 = sadd.s32 1, %s23
      %p29 = scmp.ge.s32.totalorder %s28, 1
      %s30 = scalar_select %p29, 0, %s28
      %s31 = sadd.s32 1, %s22
      %s32 = scalar_select %p29, %s31, %s22
      %p33 = scmp.ge.s32.totalorder %s32, 2
      %s34 = scalar_select %p33, 0, %s32
      %s36 = sadd.s32 %s35, 1
      %p39 = scmp.eq.s32.totalorder %s15, 1
      %p40 = scmp.ne.s32.totalorder %s35, %s37
      %p41 = scmp.eq.s32.totalorder %s15, 0
      %p42 = por %p40, %p41
      %p43 = scmp.ne.s32.totalorder %s35, %s37
      %p44 = scmp.eq.s32.totalorder %s20, 1
      %p45 = por %p43, %p44
      %p46 = scmp.ne.s32.totalorder %s37, %s38
      %p47 = scmp.eq.s32.totalorder %s20, 0
      %p48 = por %p46, %p47
      %p49 = scmp.ne.s32.totalorder %s37, %s38
      %p50 = scmp.eq.s32.totalorder %s21, 1
      %p51 = por %p49, %p50
      %p53 = scmp.ne.s32.totalorder %s38, %s52
      %p54 = scmp.eq.s32.totalorder %s21, 0
      %p55 = por %p53, %p54
      %s56 = ssub.s32 %s22, %s34
      %s57 = ssub.s32 %s23, %s30
      %s58 = sor.u32 %s56, %s57
      %p59 = scmp.eq.s32.totalorder %s58, 0
      %s61 = sadd.s32 %s60, 1
      %s62 = scalar_select %p59, %s60, %s61
      %p65 = pneg %p59
      %p66 = scmp.eq.s32.totalorder %s15, 1
      %p67 = por %p65, %p66
      %p68 = scmp.ne.s32.totalorder %s60, %s63
      %p69 = scmp.eq.s32.totalorder %s15, 0
      %p70 = por %p68, %p69
      %p71 = scmp.ne.s32.totalorder %s60, %s63
      %p72 = scmp.eq.s32.totalorder %s20, 1
      %p73 = por %p71, %p72
      %p74 = scmp.ne.s32.totalorder %s63, %s64
      %p75 = scmp.eq.s32.totalorder %s20, 0
      %p76 = por %p74, %p75
      %p77 = scmp.ne.s32.totalorder %s63, %s64
      %p78 = scmp.eq.s32.totalorder %s21, 1
      %p79 = por %p77, %p78
      %p81 = scmp.ne.s32.totalorder %s64, %s80
      %p82 = scmp.eq.s32.totalorder %s21, 0
      %p83 = por %p81, %p82
      %s84 = ssub.s32 %s22, %s34
      %s85 = ssub.s32 %s23, %s30
      %s86 = sor.u32 %s84, %s85
      %p87 = scmp.eq.s32.totalorder %s86, 0
      %s89 = sadd.s32 %s88, 1
      %s90 = scalar_select %p87, %s88, %s89
      %p93 = pneg %p87
      %p94 = scmp.eq.s32.totalorder %s15, 1
      %p95 = por %p93, %p94
      %p96 = scmp.ne.s32.totalorder %s88, %s91
      %p97 = scmp.eq.s32.totalorder %s15, 0
      %p98 = por %p96, %p97
      %p99 = scmp.ne.s32.totalorder %s88, %s91
      %p100 = scmp.eq.s32.totalorder %s20, 1
      %p101 = por %p99, %p100
      %p102 = scmp.ne.s32.totalorder %s91, %s92
      %p103 = scmp.eq.s32.totalorder %s20, 0
      %p104 = por %p102, %p103
      %p105 = scmp.ne.s32.totalorder %s91, %s92
      %p106 = scmp.eq.s32.totalorder %s21, 1
      %p107 = por %p105, %p106
      %p109 = scmp.ne.s32.totalorder %s92, %s108
      %p110 = scmp.eq.s32.totalorder %s21, 0
      %p111 = por %p109, %p110
      %p112 = scmp.le.s32.totalorder 1, %s15
      %p113 = scmp.lt.s32.totalorder %s15, 3
      %p114 = pnand %p112, %p113
      %p115 = pneg %p114
      // Predicated region
      $region9: #{tpu_custom_call.1} parent=5 // pred_check
        _
      $region10: #{tpu_custom_call.1} parent=5 // pred_check_branch
        %117 = sbr.rel (%p114) target = $region12
      $region11: #{tpu_custom_call.1} parent=5 // pred_region
        %s118 = ssub.s32 %s15, 1
        // Predicated region
        $region13: #{tpu_custom_call.1} parent=11 // pred_check
          %p119 = pneg %p48
        $region14: #{tpu_custom_call.1} parent=11 // pred_check_branch
          %121 = sbr.rel (%p119) target = $region16
        $region15: #{tpu_custom_call.1} parent=11 // pred_region
          %123 = vsyncadd [#allocation3], 0
          %s125 = sshll.u32 %s0, 4
          %s126 = int_to_ptr.hbm [resolvable:$true] %s125
          %s127 = sshll.u32 [#allocation2], 4
          %s128 = int_to_ptr.vmem [resolvable:$true] %s127
          %130 = dma.hbm_to_vmem [thread:$0]  %s126, 64, %s128, [#allocation3]
        $region16: #{tpu_custom_call.1} parent=11 // pred_fallthru
          _
      $region12: #{tpu_custom_call.1} parent=5 // pred_fallthru
        _
      %p131 = scmp.lt.s32.totalorder %s15, 2
      // Predicated region
      $region17: #{tpu_custom_call.1} parent=5 // pred_check
        %p132 = pneg %p131
      $region18: #{tpu_custom_call.1} parent=5 // pred_check_branch
        %134 = sbr.rel (%p132) target = $region20
      $region19: #{tpu_custom_call.1} parent=5 // pred_region
        // Predicated region
        $region21: #{tpu_custom_call.1} parent=19 // pred_check
          %p135 = pneg %p70
        $region22: #{tpu_custom_call.1} parent=19 // pred_check_branch
          %137 = sbr.rel (%p135) target = $region24
        $region23: #{tpu_custom_call.1} parent=19 // pred_region
          %s138 = sand.u32 %s60, 1
          %s139 = scalar_lea.sflag [#allocation6], %s138
          %s140 = sand.u32 %s60, 1
          %s141 = smul.addr %s140, 8
          %s142 = scalar_lea.vmem [#allocation5], %s141
          %s143 = smul.u32 2, %s23
          %145 = vsyncadd %s139, 0
          %s146 = smul.addr %s22, 2
          %s147 = sadd.s32 %s143, %s146
          %s148 = smul.addr %s147, 4
          %s149 = scalar_lea.hbm %s1, %s148
          %s151 = sshll.u32 %s149, 4
          %s152 = int_to_ptr.hbm [resolvable:$true] %s151
          %s153 = sshll.u32 %s142, 4
          %s154 = int_to_ptr.vmem [resolvable:$true] %s153
          %156 = dma.hbm_to_vmem [thread:$0]  %s152, 128, %s154, %s139
        $region24: #{tpu_custom_call.1} parent=19 // pred_fallthru
          _
      $region20: #{tpu_custom_call.1} parent=5 // pred_fallthru
        _
      %p157 = scmp.le.s32.totalorder 1, %s15
      %p158 = scmp.lt.s32.totalorder %s15, 3
      %p159 = pnand %p157, %p158
      %p160 = pneg %p159
      // Predicated region
      $region25: #{tpu_custom_call.1} parent=5 // pred_check
        _
      $region26: #{tpu_custom_call.1} parent=5 // pred_check_branch
        %162 = sbr.rel (%p159) target = $region28
      $region27: #{tpu_custom_call.1} parent=5 // pred_region
        %s163 = ssub.s32 %s15, 1
        // Predicated region
        $region29: #{tpu_custom_call.1} parent=27 // pred_check
          %p164 = pneg %p48
        $region30: #{tpu_custom_call.1} parent=27 // pred_check_branch
          %166 = sbr.rel (%p164) target = $region32
        $region31: #{tpu_custom_call.1} parent=27 // pred_region
          %168 = dma.done [#allocation3], 64
        $region32: #{tpu_custom_call.1} parent=27 // pred_fallthru
          _
        %s169 = sand.u32 %s63, 1
        %s170 = scalar_lea.sflag [#allocation6], %s169
        %s171 = sand.u32 %s63, 1
        %s172 = smul.addr %s171, 8
        %s173 = scalar_lea.vmem [#allocation5], %s172
        // Predicated region
        $region33: #{tpu_custom_call.1} parent=27 // pred_check
          %p174 = pneg %p76
        $region34: #{tpu_custom_call.1} parent=27 // pred_check_branch
          %176 = sbr.rel (%p174) target = $region36
        $region35: #{tpu_custom_call.1} parent=27 // pred_region
          %178 = dma.done %s170, 128
        $region36: #{tpu_custom_call.1} parent=27 // pred_fallthru
          _
        %p179 = pneg %p48
        %p180 = pneg %p45
        %s181 = sand.u32 %s63, 1
        %s182 = scalar_lea.sflag [#allocation6], %s181
        %s183 = sand.u32 %s63, 1
        %s184 = smul.addr %s183, 8
        %s185 = scalar_lea.vmem [#allocation5], %s184
        %p186 = pneg %p76
        %p187 = pneg %p73
        %p188 = pneg %p104
        %p189 = pneg %p101
        %s190 = sand.u32 %s91, 1
        %s191 = scalar_lea.sflag [#allocation4], %s190
        %s192 = sand.u32 %s91, 1
        %s193 = smul.addr %s192, 8
        %s194 = scalar_lea.vmem [#allocation7], %s193
        %s195 = smul.u32 2, %s25
        %s196 = smul.u32 2, %s25
        %v197 = vld [vmem:[%s173] sm:$0xff]
        %v198 = vld [vmem:[#allocation2] sm:$0xf]
        %200 = vst [vmem:[#allocation1] ss:$2 sm:$0xff] %v197
        %v201 = vld.sshfl [vmem:[#allocation1] sm:$0xff pattern:$0x75316420]
        %v202 = vld.sshfl [vmem:[#allocation1 + $0x8] sm:$0xff pattern:$0x75316420]
        %203 = vst [vmem:[#allocation1] ss:$2 sm:$0xff] %v197
        %v204 = vld.sshfl [vmem:[#allocation1] sm:$0xff pattern:$0x75316420]
        %v205 = vld.sshfl [vmem:[#allocation1 + $0x8] sm:$0xff pattern:$0x75316420]
        %vm208 = vcmask 31744
        %v210 = vsel %vm208, %v198, 0
        %vm212 = vcmask 1043456
        %v213 = vsel %vm212, %v201, 0
        %v215 = vsel %vm212, %v202, 0
        %217 = vmatpush.msra.mxu0 0.0
        %218 = vmatpush.msra.mxu0 0.0
        %219 = vmatpush.msra.mxu0 0.0
        %220 = vmatpush.msra.mxu0 0.0
        %221 = vmatpush.msra.mxu0 0.0
        %222 = vmatpush.msra.mxu0 0.0
        %223 = vmatpush.msra.mxu0 0.0
        %224 = vmatpush.msra.mxu0 0.0
        %225 = vmatpush.msra.mxu0 0.0
        %226 = vmatpush.msra.mxu0 0.0
        %227 = vmatpush.msra.mxu0 0.0
        %228 = vmatpush.msra.mxu0 0.0
        %229 = vmatpush.msra.mxu0 0.0
        %230 = vmatpush.msra.mxu0 0.0
        %231 = vmatpush.msra.mxu0 0.0
        %232 = vmatpush.msra.mxu0 %v213
        %233 = vmatmul.f32.gmra.mxu0 %v210
        %v234 = vpop.f32.mrf.mxu0
        %v235 = vadd.f32 %v204, %v234
        %236 = vdwg.mxu0
        %237 = vmatpush.msra.mxu0 0.0
        %238 = vmatpush.msra.mxu0 0.0
        %239 = vmatpush.msra.mxu0 0.0
        %240 = vmatpush.msra.mxu0 0.0
        %241 = vmatpush.msra.mxu0 0.0
        %242 = vmatpush.msra.mxu0 0.0
        %243 = vmatpush.msra.mxu0 0.0
        %244 = vmatpush.msra.mxu0 0.0
        %245 = vmatpush.msra.mxu0 0.0
        %246 = vmatpush.msra.mxu0 0.0
        %247 = vmatpush.msra.mxu0 0.0
        %248 = vmatpush.msra.mxu0 0.0
        %249 = vmatpush.msra.mxu0 0.0
        %250 = vmatpush.msra.mxu0 0.0
        %251 = vmatpush.msra.mxu0 0.0
        %252 = vmatpush.msra.mxu0 %v215
        %253 = vmatmul.f32.gmra.mxu0 %v210
        %v254 = vpop.f32.mrf.mxu0
        %v255 = vadd.f32 %v205, %v254
        %256 = vdwg.mxu0
        %v259 = vrot.slane %v255, 4
        %v260 = vsel %vm212, %v235, %v259
        %262 = vst [vmem:[%s194] sm:$0xff] %v260
        %s263 = sand.u32 %s91, 1
        %s264 = scalar_lea.sflag [#allocation4], %s263
        %s265 = sand.u32 %s91, 1
        %s266 = smul.addr %s265, 8
        %s267 = scalar_lea.vmem [#allocation7], %s266
        // Predicated region
        $region37: #{tpu_custom_call.1} parent=27 // pred_check
          %p268 = pneg %p101
        $region38: #{tpu_custom_call.1} parent=27 // pred_check_branch
          %270 = sbr.rel (%p268) target = $region40
        $region39: #{tpu_custom_call.1} parent=27 // pred_region
          %s271 = smul.u32 2, %s25
          %273 = vsyncadd %s264, 0
          %s274 = smul.addr %s24, 2
          %s275 = sadd.s32 %s271, %s274
          %s276 = smul.addr %s275, 4
          %s277 = scalar_lea.hbm %s2, %s276
          %s279 = sshll.u32 %s267, 4
          %s280 = int_to_ptr.vmem [resolvable:$true] %s279
          %s281 = sshll.u32 %s277, 4
          %s282 = int_to_ptr.hbm [resolvable:$true] %s281
          %284 = dma.vmem_to_hbm [thread:$0]  %s280, 128, %s282, %s264
        $region40: #{tpu_custom_call.1} parent=27 // pred_fallthru
          _
      $region28: #{tpu_custom_call.1} parent=5 // pred_fallthru
        _
      %p285 = scmp.le.s32.totalorder 2, %s15
      // Predicated region
      $region41: #{tpu_custom_call.1} parent=5 // pred_check
        %p286 = pneg %p285
      $region42: #{tpu_custom_call.1} parent=5 // pred_check_branch
        %288 = sbr.rel (%p286) target = $region44
      $region43: #{tpu_custom_call.1} parent=5 // pred_region
        %s289 = ssub.s32 %s15, 2
        // Predicated region
        $region45: #{tpu_custom_call.1} parent=43 // pred_check
          %p290 = pneg %p107
        $region46: #{tpu_custom_call.1} parent=43 // pred_check_branch
          %292 = sbr.rel (%p290) target = $region48
        $region47: #{tpu_custom_call.1} parent=43 // pred_region
          %s293 = sand.u32 %s92, 1
          %s294 = scalar_lea.sflag [#allocation4], %s293
          %s295 = sand.u32 %s92, 1
          %s296 = smul.addr %s295, 8
          %s297 = scalar_lea.vmem [#allocation7], %s296
          %299 = dma.done %s294, 128
        $region48: #{tpu_custom_call.1} parent=43 // pred_fallthru
          _
      $region44: #{tpu_custom_call.1} parent=5 // pred_fallthru
        _
    $region6: #{tpu_custom_call.1} parent=1 // loop_footer
      %s19 = sadd.s32 1, %s15
    $region7: #{tpu_custom_call.1} parent=1 // loop_footer_branch
      %14 = sbr.rel target = $region3
    $region8: #{tpu_custom_call.1} parent=1 // loop_exit
      _
    %300 = vsyncpa [#allocation3], 1
    %s301 = scalar_lea.sflag [#allocation3], 1
    %302 = vsyncpa %s301, 1
    %303 = vsyncpa [#allocation6], 1
    %s304 = scalar_lea.sflag [#allocation6], 1
    %305 = vsyncpa %s304, 1
    %306 = vsyncpa [#allocation4], 1
    %s307 = scalar_lea.sflag [#allocation4], 1
    %308 = vsyncpa %s307, 1

</llo_original>
